<compile_context>
chip_gen: v7x
topology: tpu7x:2x2x1
jax: 0.10.0
libtpu: 0.0.40
codegen_flags: <defaults>
</compile_context>

<pallas_src>
import functools
import math

import jax
import jax.numpy as jnp
import numpy as np
from jax import lax
from jax.experimental import pallas as pl
from jax.experimental.pallas import tpu as pltpu


def _posenc_kernel(seed_ref, x_ref, pe_ref, o_ref, *,
                   keep_threshold, scale, apply_dropout, use_hw_prng,
                   TB, TR, C, RC):
    """x_ref/o_ref: (TB, TR, C) tiles; pe_ref: (1, TR, C), broadcast over TB."""
    y = x_ref[...] + pe_ref[...]

    if apply_dropout:
        if use_hw_prng:
            # Hardware PRNG: ~4-5x fewer vector ops, but the bit-stream becomes
            # a function of the tiling (seeded per program_id).
            pltpu.prng_seed(seed_ref[0], pl.program_id(0), pl.program_id(1))
            bits = pltpu.prng_random_bits(y.shape)
            if bits.dtype != jnp.uint32:
                bits = pltpu.bitcast(bits, jnp.uint32)
        else:
            # Counter-hash (lowbias32): bits are a pure function of
            # (seed, global element index) -> deterministic & tiling-independent.
            # All per-tile constants fold into one scalar (scalar ALU is free).
            base = (seed_ref[0].astype(jnp.uint32) * jnp.uint32(0x9E3779B9)
                    + pl.program_id(1).astype(jnp.uint32)
                    * jnp.uint32((TB * RC) & 0xFFFFFFFF)
                    + pl.program_id(0).astype(jnp.uint32)
                    * jnp.uint32((TR * C) & 0xFFFFFFFF))
            h = (base
                 + lax.broadcasted_iota(jnp.int32, y.shape, 1).astype(jnp.uint32)
                 * jnp.uint32(C)
                 + lax.broadcasted_iota(jnp.int32, y.shape, 2).astype(jnp.uint32))
            if TB > 1:
                h = h + (lax.broadcasted_iota(jnp.int32, y.shape, 0)
                         .astype(jnp.uint32) * jnp.uint32(RC & 0xFFFFFFFF))
            # 2-round mix (xor-shift / mul), good avalanche, minimal VALU cost.
            h = h ^ (h >> 16)
            h = h * jnp.uint32(0x21F0AAAD)
            h = h ^ (h >> 15)
            h = h * jnp.uint32(0x735A2D97)
            h = h ^ (h >> 15)
            bits = h

        # keep with prob (1-p): single full-width uint32 threshold compare.
        keep = bits < jnp.uint32(keep_threshold)
        y = jnp.where(keep, y * scale, jnp.zeros_like(y))

    o_ref[...] = y


def make_positional_encoding(max_seq_len: int, d_model: int) -> jnp.ndarray:
    """Deterministic PE table, identical math to the PyTorch __init__."""
    position = jnp.arange(max_seq_len, dtype=jnp.float32)[:, None]
    div_term = jnp.exp(
        jnp.arange(0, d_model, 2, dtype=jnp.float32) * (-math.log(10000.0) / d_model)
    )
    angles = position * div_term                       # (max_seq_len, d_model//2)
    pe = jnp.zeros((max_seq_len, d_model), jnp.float32)
    pe = pe.at[:, 0::2].set(jnp.sin(angles))
    pe = pe.at[:, 1::2].set(jnp.cos(angles))
    return pe


def positional_encoding_forward(x, pe_table, *, dropout_p=0.1, training=True,
                                seed=0, use_hw_prng=False):
    """x: [B, S, D]. Returns dropout(x + PE[:S]) with the same shape/dtype."""
    B, S, D = x.shape
    dtype = x.dtype
    itemsize = jnp.dtype(dtype).itemsize

    # PE in the input dtype (no f32 round-trip of HBM traffic for narrow inputs).
    # Note: PyTorch would promote bf16 x to f32 here; we keep the input dtype.
    pe = pe_table[:S].astype(dtype)

    # ---- lane-dense re-tiling: view each batch row's S*D elems as (R, C) ----
    n = S * D
    n_pad = ((n + 127) // 128) * 128          # pad to a multiple of 128 lanes
    x2 = x.reshape(B, n)
    pe2 = pe.reshape(1, n)
    if n_pad != n:
        x2 = jnp.pad(x2, ((0, 0), (0, n_pad - n)))
        pe2 = jnp.pad(pe2, ((0, 0), (0, n_pad - n)))

    # Prefer a wide C that still leaves R >= 8 (fills sublanes); 128 always divides.
    C = next((c for c in (1024, 512, 256, 128)
              if n_pad % c == 0 and n_pad // c >= 8), 128)
    R = n_pad // C
    RC = R * C

    x3 = x2.reshape(B, R, C)
    pe3 = pe2.reshape(1, R, C)
    seed_arr = jnp.array([seed], dtype=jnp.int32)

    # ---- tile selection: ~4 MiB per tile, sublane-granular TR ----
    TILE_BYTES = 4 * 1024 * 1024
    sub = max(8, 32 // itemsize)              # f32 -> 8, bf16 -> 16, int8 -> 32
    row_bytes = C * itemsize
    max_rows = max(1, TILE_BYTES // row_bytes)
    if R > max_rows:
        TB = 1
        TR = max(sub, (max_rows // sub) * sub)
        for cand in range(TR, sub - 1, -sub):     # prefer TR dividing R
            if R % cand == 0:
                TR = cand
                break
    else:
        TR = R
        per_batch_bytes = RC * itemsize
        TB = int(min(B, max(1, TILE_BYTES // per_batch_bytes)))

    p = float(dropout_p)
    apply_dropout = bool(training) and p > 0.0
    if p >= 1.0:
        keep_threshold, scale = 0, 0.0
    else:
        keep_threshold = min((1 << 32) - 1, int(round((1.0 - p) * float(1 << 32))))
        scale = 1.0 / (1.0 - p)

    kernel = functools.partial(
        _posenc_kernel,
        keep_threshold=keep_threshold, scale=scale,
        apply_dropout=apply_dropout, use_hw_prng=bool(use_hw_prng),
        TB=TB, TR=TR, C=C, RC=RC)

    # Batch-tiles innermost -> PE block index constant across consecutive steps
    # (PE HBM traffic cut by ~B/TB x).  Both axes "parallel" (no accumulator).
    grid = (pl.cdiv(R, TR), pl.cdiv(B, TB))

    cost = pl.CostEstimate(
        flops=2 * B * n_pad,
        transcendentals=0,
        bytes_accessed=(2 * B * n_pad + n_pad) * itemsize)

    out = pl.pallas_call(
        kernel,
        out_shape=jax.ShapeDtypeStruct((B, R, C), dtype),
        grid_spec=pltpu.PrefetchScalarGridSpec(
            num_scalar_prefetch=1,                 # seed lands in SMEM
            grid=grid,
            in_specs=[
                pl.BlockSpec((TB, TR, C), lambda ri, bi, s: (bi, ri, 0)),  # x
                # PE reused across the inner batch axis.
                # TODO(synk): on v7x consider pipeline_mode=pl.Buffered(1) here
                # to free one buffer of VMEM for larger x/out tiles.
                pl.BlockSpec((1, TR, C), lambda ri, bi, s: (0, ri, 0)),    # PE
            ],
            out_specs=pl.BlockSpec((TB, TR, C), lambda ri, bi, s: (bi, ri, 0)),
        ),
        compiler_params=pltpu.CompilerParams(
            dimension_semantics=("parallel", "parallel"),
            vmem_limit_bytes=48 * 1024 * 1024,
        ),
        cost_estimate=cost,
    )(seed_arr, x3, pe3)

    out = out.reshape(B, n_pad)
    if n_pad != n:
        out = out[:, :n]
    return out.reshape(B, S, D)


if __name__ == "__main__":
    B, S, D = 2, 8, 32
    MAX_SEQ_LEN = 64
    DROPOUT_P = 0.1

    key = jax.random.PRNGKey(0)
    x = jax.random.normal(key, (B, S, D), dtype=jnp.float32)

    pe_table = make_positional_encoding(MAX_SEQ_LEN, D)

    # Eval mode (dropout disabled) -- must match x + PE exactly.
    out_eval = positional_encoding_forward(
        x, pe_table, dropout_p=DROPOUT_P, training=False, seed=0)
    out_eval = jax.block_until_ready(out_eval)
    ref = np.asarray(x) + np.asarray(pe_table[:S])[None]
    np.testing.assert_allclose(np.asarray(out_eval), ref, rtol=1e-6, atol=1e-6)

    # Training mode (dropout active, deterministic via counter-hash + seed).
    out_train = positional_encoding_forward(
        x, pe_table, dropout_p=DROPOUT_P, training=True, seed=1234)
    out_train = jax.block_until_ready(out_train)
    out_train_np = np.asarray(out_train)
    assert out_train_np.shape == (B, S, D)
    assert np.all(np.isfinite(out_train_np))

    # Dropout semantics: every element is either 0 or (x+pe)/(1-p).
    scaled_ref = ref / (1.0 - DROPOUT_P)
    nonzero = out_train_np != 0.0
    np.testing.assert_allclose(out_train_np[nonzero], scaled_ref[nonzero],
                               rtol=1e-5, atol=1e-5)
    frac_dropped = 1.0 - nonzero.mean()
    assert 0.0 < frac_dropped < 0.35, f"unexpected drop fraction {frac_dropped}"

    print("KERNEL_OK")
</pallas_src>

<mosaic_0001>
module attributes {stable_mosaic.version = 11 : i64} {
  func.func @_posenc_kernel(%arg0: i32, %arg1: i32, %arg2: memref<1xi32, #tpu.memory_space<smem>>, %arg3: memref<2x2x128xf32, #tpu.memory_space<vmem>>, %arg4: memref<1x2x128xf32, #tpu.memory_space<vmem>>, %arg5: memref<2x2x128xf32, #tpu.memory_space<vmem>>) attributes {dimension_semantics = [#tpu.dimension_semantics<parallel>, #tpu.dimension_semantics<parallel>], iteration_bounds = array<i64: 1, 1>, scalar_prefetch = 1 : i64, scratch_operands = 0 : i64, tpu.core_type = #tpu.core_type<tc>, window_params = [{transform_indices = @transform_0, window_bounds = array<i64: 2, 2, 128>}, {transform_indices = @transform_1, window_bounds = array<i64: 1, 2, 128>}, {transform_indices = @transform_2, window_bounds = array<i64: 2, 2, 128>}]} {
    %c0 = arith.constant 0 : index
    %c0_0 = arith.constant 0 : index
    %c0_1 = arith.constant 0 : index
    %0 = vector.load %arg3[%c0, %c0_0, %c0_1] : memref<2x2x128xf32, #tpu.memory_space<vmem>>, vector<2x2x128xf32>
    %c0_2 = arith.constant 0 : index
    %c0_3 = arith.constant 0 : index
    %c0_4 = arith.constant 0 : index
    %1 = vector.load %arg4[%c0_2, %c0_3, %c0_4] : memref<1x2x128xf32, #tpu.memory_space<vmem>>, vector<1x2x128xf32>
    %2 = vector.broadcast %1 : vector<1x2x128xf32> to vector<2x2x128xf32>
    %3 = arith.addf %0, %2 : vector<2x2x128xf32>
    %c0_5 = arith.constant 0 : index
    %c0_6 = arith.constant 0 : index
    %c0_7 = arith.constant 0 : index
    %4 = vector.load %arg5[%c0_5, %c0_6, %c0_7] : memref<2x2x128xf32, #tpu.memory_space<vmem>>, vector<2x2x128xf32>
    tpu.vector_store %arg5[%c0_5, %c0_6, %c0_7], %3 {strides = array<i32>} : memref<2x2x128xf32, #tpu.memory_space<vmem>>, vector<2x2x128xf32>,
    return
  }
  func.func @transform_0(%arg0: i32, %arg1: i32, %arg2: memref<1xi32, #tpu.memory_space<smem>>) -> (i32, i32, i32) {
    %c0_i32 = arith.constant 0 : i32
    %c0_i32_0 = arith.constant 0 : i32
    return %arg1, %arg0, %c0_i32 : i32, i32, i32
  }
  func.func @transform_1(%arg0: i32, %arg1: i32, %arg2: memref<1xi32, #tpu.memory_space<smem>>) -> (i32, i32, i32) {
    %c0_i32 = arith.constant 0 : i32
    %c0_i32_0 = arith.constant 0 : i32
    %c0_i32_1 = arith.constant 0 : i32
    return %c0_i32, %arg0, %c0_i32_0 : i32, i32, i32
  }
  func.func @transform_2(%arg0: i32, %arg1: i32, %arg2: memref<1xi32, #tpu.memory_space<smem>>) -> (i32, i32, i32) {
    %c0_i32 = arith.constant 0 : i32
    %c0_i32_0 = arith.constant 0 : i32
    return %arg1, %arg0, %c0_i32 : i32, i32, i32
  }
}

</mosaic_0001>

<llo_original>
// kernel: tpu_custom_call.1
$region0: #{tpu_custom_call.1}
  #allocation0 [shape = 'u32[]', space=smem, size = 0x4, offset = 0x4, fixed_abs, tag = 'smem constant byte address 0x4 - core index']
  #allocation1 [shape = 'u32[144,128]{1,0:T(1,128)}', space=vmem, size = 0x12000, scoped, tag = 'internal scratch']
  #allocation2 [shape = 's32[1]{0}', space=sflag, size = 0x4, scoped, tag = 'scoped memory for tpu_custom_call.1']
  #allocation3 [shape = 's32[1]{0:T(128)S(6)}', space=smem, size = 0x200, scoped, tag = 'prefetched SMEM operand 0']
  %s0 = inlined_call_operand.<no memory space> [shape: s32[1], index: 0, kind: input, shape index: {}]
  %s1 = inlined_call_operand.hbm [shape: f32[2,2,128], index: 1, kind: input, shape index: {}]
  %s2 = inlined_call_operand.vmem [shape: f32[1,2,128], index: 2, kind: input, shape index: {}]
  %s3 = inlined_call_operand.hbm [shape: f32[2,2,128], index: 3, kind: output, shape index: {}]
  %s4 = sld [smem:[#allocation0]]
  $region22: #{tpu_custom_call.1} parent=0
    _
  %s6 = ssub.s32 1, %s4
  %s7 = scalar_select 0, %s6, %s4
  %8 = sst [smem:[#allocation3]] %s0
  $region1: #{tpu_custom_call.1} parent=0
    #allocation4 [shape = 'u8[2048]{0}', space=vmem, size = 0x800, scoped, tag = 'input window, operand 1, single buffered']
    #allocation5 [shape = 's32[1]{0}', space=sflag, size = 0x4, scoped, tag = 'scoped memory for tpu_custom_call.1']
    #allocation6 [shape = 's32[1]{0}', space=sflag, size = 0x4, scoped, tag = 'scoped memory for tpu_custom_call.1']
    #allocation7 [shape = 'u8[2048]{0}', space=vmem, size = 0x800, scoped, tag = 'output window, operand 0, single buffered']
    %9 = vsyncpa [#allocation5], 0
    %10 = vsyncpa [#allocation6], 0
    // Predicated region
    $region2: #{tpu_custom_call.1} parent=1 // pred_check
      _
    $region3: #{tpu_custom_call.1} parent=1 // pred_check_branch
      %12 = sbr.rel (0) target = $region5
    $region4: #{tpu_custom_call.1} parent=1 // pred_region
      %s14 = ssub.s32 64, 64
      %15 = vsyncadd [#allocation5], %s14
      %s16 = sshll.u32 [#allocation4], 4
      %s17 = int_to_ptr.vmem [resolvable:$true] %s16
      %22 = dma.hbm_to_vmem [thread:$0]  %s1, 64, %s17, [#allocation5], 32, 32, 2
    $region5: #{tpu_custom_call.1} parent=1 // pred_fallthru
      _
    // Predicated region
    $region6: #{tpu_custom_call.1} parent=1 // pred_check
      _
    $region7: #{tpu_custom_call.1} parent=1 // pred_check_branch
      %24 = sbr.rel (0) target = $region9
    $region8: #{tpu_custom_call.1} parent=1 // pred_region
      _
    $region9: #{tpu_custom_call.1} parent=1 // pred_fallthru
      _
    // Predicated region
    $region10: #{tpu_custom_call.1} parent=1 // pred_check
      _
    $region11: #{tpu_custom_call.1} parent=1 // pred_check_branch
      %26 = sbr.rel (0) target = $region13
    $region12: #{tpu_custom_call.1} parent=1 // pred_region
      %27 = dma.done [#allocation5], 64
    $region13: #{tpu_custom_call.1} parent=1 // pred_fallthru
      _
    %v28 = vld [vmem:[#allocation4] sm:$0x3]
    %v29 = vld [vmem:[#allocation4 + $0x2] sm:$0x3]
    %v30 = vld [vmem:[%s2] sm:$0x3]
    %v31 = vadd.f32 %v28, %v30
    %v32 = vadd.f32 %v29, %v30
    %33 = vst [vmem:[#allocation7] sm:$0x3] %v31
    %34 = vst [vmem:[#allocation7 + $0x2] sm:$0x3] %v32
    // Predicated region
    $region14: #{tpu_custom_call.1} parent=1 // pred_check
      _
    $region15: #{tpu_custom_call.1} parent=1 // pred_check_branch
      %36 = sbr.rel (0) target = $region17
    $region16: #{tpu_custom_call.1} parent=1 // pred_region
      %s38 = ssub.s32 64, 64
      %39 = vsyncadd [#allocation6], %s38
      %s40 = sshll.u32 [#allocation7], 4
      %s41 = int_to_ptr.vmem [resolvable:$true] %s40
      %46 = dma.vmem_to_hbm [thread:$0]  %s41, 64, %s3, [#allocation6], 32, 32, 2
    $region17: #{tpu_custom_call.1} parent=1 // pred_fallthru
      _
    // Predicated region
    $region18: #{tpu_custom_call.1} parent=1 // pred_check
      _
    $region19: #{tpu_custom_call.1} parent=1 // pred_check_branch
      %48 = sbr.rel (0) target = $region21
    $region20: #{tpu_custom_call.1} parent=1 // pred_region
      %49 = dma.done [#allocation6], 64
    $region21: #{tpu_custom_call.1} parent=1 // pred_fallthru
      _
    %50 = vsyncpa [#allocation5], 1
    %51 = vsyncpa [#allocation6], 1

</llo_original>
